<compile_context>
chip_gen: v6e
topology: v6e:2x2x1
jax: 0.10.0
libtpu: 0.0.40
codegen_flags: <defaults>
</compile_context>

<pallas_src>
import numpy as np
import jax
import jax.numpy as jnp
from jax.experimental import pallas as pl
from jax.experimental.pallas import tpu as pltpu


BN_EPS = 1e-3  # matches nn.BatchNorm1d(eps=0.001)


# -------------------- in-kernel building block -------------------------------
def _fc_block(h, w_ref, g_ref, beta_ref):
    """Linear (no bias) -> BatchNorm1d (training-mode batch stats) -> ReLU.

    The Linear bias is intentionally dropped: BN subtracts the batch mean right
    after, which cancels any per-feature constant exactly.
    """
    y = jnp.dot(h.astype(jnp.bfloat16), w_ref[...],
                preferred_element_type=jnp.float32)           # bf16 MXU, f32 acc
    mu = jnp.mean(y, axis=0, keepdims=True)                   # sublane reduction (XLU)
    d = y - mu
    var = jnp.mean(d * d, axis=0, keepdims=True)              # biased var, as PyTorch BN
    scale = g_ref[...] * jax.lax.rsqrt(var + BN_EPS)          # fold gamma into rsqrt (1,H)
    return jnp.maximum(d * scale + beta_ref[...], 0.0)


# -------------------- the Pallas kernel --------------------------------------
def _encoder_kernel(x_ref,
                    w0_ref, g0_ref, be0_ref,
                    w1_ref, g1_ref, be1_ref,
                    w2_ref, g2_ref, be2_ref,
                    wh_ref, bh_ref,
                    eps_ref,
                    qm_ref, qv_ref, z_ref):
    # log_variational preprocessing
    x = jnp.log1p(x_ref[...])

    # 3-layer FC encoder: Linear -> BN -> ReLU
    h = _fc_block(x, w0_ref, g0_ref, be0_ref)
    h = _fc_block(h, w1_ref, g1_ref, be1_ref)
    h = _fc_block(h, w2_ref, g2_ref, be2_ref)

    # fused mean|var head: single (B, 2*n_output) matmul, slice at lane-aligned boundary
    head = jnp.dot(h.astype(jnp.bfloat16), wh_ref[...],
                   preferred_element_type=jnp.float32) + bh_ref[...]
    n_out = qm_ref.shape[1]
    q_m = head[:, :n_out]
    raw = head[:, n_out:]

    clipped = jnp.clip(raw, -4.0, 4.0)
    std = jnp.exp(0.25 * clipped)        # sqrt(q_v) with a single EUP exp
    q_v = std * std                      # == exp(clipped / 2), VPU mul (no 2nd EUP op)

    qm_ref[...] = q_m
    qv_ref[...] = q_v
    z_ref[...] = q_m + std * eps_ref[...]   # reparameterized latent


# -------------------- wrapper -------------------------------------------------
def bayesian_etm_encoder(x, params, eps):
    B, n_input = x.shape
    H = params["w0"].shape[1]
    n_output = params["wm"].shape[1]

    # bf16 MXU weights (single-pass matmul, half the weight bytes); f32 accumulation in-kernel.
    w0 = params["w0"].astype(jnp.bfloat16)
    w1 = params["w1"].astype(jnp.bfloat16)
    w2 = params["w2"].astype(jnp.bfloat16)
    # Fused mean/var head: (H, 2*n_output) fills the 256-wide MXU on v6e/v7x.
    wh = jnp.concatenate([params["wm"], params["wv"]], axis=1).astype(jnp.bfloat16)
    bh = jnp.concatenate([params["bm"], params["bv"]], axis=1).astype(jnp.float32)

    # NOTE: b0/b1/b2 are not passed — training-mode BN cancels them exactly.
    operands = (
        x,
        w0, params["g0"], params["be0"],
        w1, params["g1"], params["be1"],
        w2, params["g2"], params["be2"],
        wh, bh,
        eps,
    )

    vmem = pl.BlockSpec(memory_space=pltpu.MemorySpace.VMEM)

    flops = 2 * B * (n_input * H + 2 * H * H + H * 2 * n_output) + 20 * B * H
    transcendentals = B * n_input + 3 * H + B * n_output
    bytes_accessed = (sum(int(np.prod(a.shape)) * a.dtype.itemsize for a in operands)
                      + 3 * B * n_output * 4)

    out = pl.pallas_call(
        _encoder_kernel,
        out_shape=(
            jax.ShapeDtypeStruct((B, n_output), jnp.float32),   # q_m
            jax.ShapeDtypeStruct((B, n_output), jnp.float32),   # q_v
            jax.ShapeDtypeStruct((B, n_output), jnp.float32),   # latent
        ),
        in_specs=[vmem] * len(operands),
        out_specs=(vmem, vmem, vmem),
        cost_estimate=pl.CostEstimate(flops=flops,
                                      transcendentals=transcendentals,
                                      bytes_accessed=bytes_accessed),
    )(*operands)
    return out   # (q_m, q_v, latent)


# -------------------- pure-JAX f32 reference (PyTorch semantics) -------------
def _reference(x, params, eps):
    h = jnp.log1p(x)
    for i in range(3):
        w, b = params[f"w{i}"], params[f"b{i}"]
        g, be = params[f"g{i}"], params[f"be{i}"]
        y = jnp.dot(h, w, precision="highest") + b
        mu = jnp.mean(y, axis=0, keepdims=True)
        var = jnp.mean((y - mu) ** 2, axis=0, keepdims=True)
        h = jnp.maximum((y - mu) / jnp.sqrt(var + BN_EPS) * g + be, 0.0)
    q_m = jnp.dot(h, params["wm"], precision="highest") + params["bm"]
    q_v = jnp.exp(jnp.clip(jnp.dot(h, params["wv"], precision="highest") + params["bv"],
                           -4.0, 4.0) / 2.0)
    latent = q_m + jnp.sqrt(q_v) * eps
    return q_m, q_v, latent


# -------------------- driver --------------------------------------------------
if __name__ == "__main__":
    B, n_input, n_hidden, n_output = 16, 256, 128, 128

    key = jax.random.PRNGKey(0)
    ks = jax.random.split(key, 10)

    # count-like non-negative input (encoder applies log(1+x))
    x = jax.random.uniform(ks[0], (B, n_input), minval=0.0, maxval=20.0).astype(jnp.float32)

    def lin(k, fan_in, fan_out):
        kw, kb = jax.random.split(k)
        bound = 1.0 / np.sqrt(fan_in)
        w = jax.random.uniform(kw, (fan_in, fan_out), minval=-bound, maxval=bound)
        b = jax.random.uniform(kb, (1, fan_out), minval=-bound, maxval=bound)
        return w.astype(jnp.float32), b.astype(jnp.float32)

    params = {}
    params["w0"], params["b0"] = lin(ks[1], n_input, n_hidden)
    params["w1"], params["b1"] = lin(ks[2], n_hidden, n_hidden)
    params["w2"], params["b2"] = lin(ks[3], n_hidden, n_hidden)
    params["wm"], params["bm"] = lin(ks[4], n_hidden, n_output)
    params["wv"], params["bv"] = lin(ks[5], n_hidden, n_output)

    # BatchNorm affine params (PyTorch init is weight=1 / bias=0; perturbed slightly
    # so the affine path is actually exercised)
    for i, k in enumerate((ks[6], ks[7], ks[8])):
        kg, kb = jax.random.split(k)
        params[f"g{i}"] = (1.0 + 0.1 * jax.random.normal(kg, (1, n_hidden))).astype(jnp.float32)
        params[f"be{i}"] = (0.1 * jax.random.normal(kb, (1, n_hidden))).astype(jnp.float32)

    # deterministic reparameterization noise
    eps = jax.random.normal(ks[9], (B, n_output), dtype=jnp.float32)

    q_m, q_v, latent = bayesian_etm_encoder(x, params, eps)
    jax.block_until_ready((q_m, q_v, latent))

    # Reference is full-f32 (PyTorch semantics, with biases); the kernel deliberately uses
    # bf16 MXU inputs + f32 accumulation, so a looser tolerance is the explicit decision here.
    rm, rv, rl = _reference(x, params, eps)
    np.testing.assert_allclose(np.asarray(q_m), np.asarray(rm), rtol=3e-2, atol=3e-2)
    np.testing.assert_allclose(np.asarray(q_v), np.asarray(rv), rtol=3e-2, atol=3e-2)
    np.testing.assert_allclose(np.asarray(latent), np.asarray(rl), rtol=3e-2, atol=3e-2)

    print("KERNEL_OK")
</pallas_src>

<mosaic_0001>
module attributes {stable_mosaic.version = 11 : i64} {
  func.func @_encoder_kernel(%arg0: memref<16x256xf32, #tpu.memory_space<vmem>>, %arg1: memref<256x128xbf16, #tpu.memory_space<vmem>>, %arg2: memref<1x128xf32, #tpu.memory_space<vmem>>, %arg3: memref<1x128xf32, #tpu.memory_space<vmem>>, %arg4: memref<128x128xbf16, #tpu.memory_space<vmem>>, %arg5: memref<1x128xf32, #tpu.memory_space<vmem>>, %arg6: memref<1x128xf32, #tpu.memory_space<vmem>>, %arg7: memref<128x128xbf16, #tpu.memory_space<vmem>>, %arg8: memref<1x128xf32, #tpu.memory_space<vmem>>, %arg9: memref<1x128xf32, #tpu.memory_space<vmem>>, %arg10: memref<128x256xbf16, #tpu.memory_space<vmem>>, %arg11: memref<1x256xf32, #tpu.memory_space<vmem>>, %arg12: memref<16x128xf32, #tpu.memory_space<vmem>>, %arg13: memref<16x128xf32, #tpu.memory_space<vmem>>, %arg14: memref<16x128xf32, #tpu.memory_space<vmem>>, %arg15: memref<16x128xf32, #tpu.memory_space<vmem>>) attributes {dimension_semantics = [], scalar_prefetch = 0 : i64, scratch_operands = 0 : i64, tpu.core_type = #tpu.core_type<tc>} {
    %c0 = arith.constant 0 : index
    %c0_0 = arith.constant 0 : index
    %0 = vector.load %arg0[%c0, %c0_0] : memref<16x256xf32, #tpu.memory_space<vmem>>, vector<16x256xf32>
    %1 = math.log1p %0 : vector<16x256xf32>
    %2 = arith.truncf %1 : vector<16x256xf32> to vector<16x256xbf16>
    %c0_1 = arith.constant 0 : index
    %c0_2 = arith.constant 0 : index
    %3 = vector.load %arg1[%c0_1, %c0_2] : memref<256x128xbf16, #tpu.memory_space<vmem>>, vector<256x128xbf16>
    %cst = arith.constant dense<0.000000e+00> : vector<16x128xf32>
    %4 = tpu.matmul %2, %3, %cst {dimension_numbers = #tpu.dot_dimension_numbers<[1], [0], [0], [1], [0, 0, 1, 1], [], []>} : vector<16x256xbf16>, vector<256x128xbf16>, vector<16x128xf32> -> vector<16x128xf32>
    %cst_3 = arith.constant dense<0.000000e+00> : vector<128xf32>
    %5 = vector.multi_reduction <add>, %4, %cst_3 [0] : vector<16x128xf32> to vector<128xf32>
    %6 = vector.shape_cast %5 : vector<128xf32> to vector<1x128xf32>
    %cst_4 = arith.constant 1.600000e+01 : f32
    %7 = vector.broadcast %cst_4 : f32 to vector<1x128xf32>
    %8 = arith.divf %6, %7 : vector<1x128xf32>
    %9 = vector.broadcast %8 : vector<1x128xf32> to vector<16x128xf32>
    %10 = arith.subf %4, %9 : vector<16x128xf32>
    %11 = arith.mulf %10, %10 : vector<16x128xf32>
    %cst_5 = arith.constant dense<0.000000e+00> : vector<128xf32>
    %12 = vector.multi_reduction <add>, %11, %cst_5 [0] : vector<16x128xf32> to vector<128xf32>
    %13 = vector.shape_cast %12 : vector<128xf32> to vector<1x128xf32>
    %cst_6 = arith.constant 1.600000e+01 : f32
    %14 = vector.broadcast %cst_6 : f32 to vector<1x128xf32>
    %15 = arith.divf %13, %14 : vector<1x128xf32>
    %c0_7 = arith.constant 0 : index
    %c0_8 = arith.constant 0 : index
    %16 = vector.load %arg2[%c0_7, %c0_8] : memref<1x128xf32, #tpu.memory_space<vmem>>, vector<1x128xf32>
    %cst_9 = arith.constant 1.000000e-03 : f32
    %17 = vector.broadcast %cst_9 : f32 to vector<1x128xf32>
    %18 = arith.addf %15, %17 : vector<1x128xf32>
    %19 = math.rsqrt %18 : vector<1x128xf32>
    %20 = arith.mulf %16, %19 : vector<1x128xf32>
    %21 = vector.broadcast %20 : vector<1x128xf32> to vector<16x128xf32>
    %22 = arith.mulf %10, %21 : vector<16x128xf32>
    %c0_10 = arith.constant 0 : index
    %c0_11 = arith.constant 0 : index
    %23 = vector.load %arg3[%c0_10, %c0_11] : memref<1x128xf32, #tpu.memory_space<vmem>>, vector<1x128xf32>
    %24 = vector.broadcast %23 : vector<1x128xf32> to vector<16x128xf32>
    %25 = arith.addf %22, %24 : vector<16x128xf32>
    %cst_12 = arith.constant 0.000000e+00 : f32
    %26 = vector.broadcast %cst_12 : f32 to vector<16x128xf32>
    %27 = arith.maximumf %25, %26 : vector<16x128xf32>
    %28 = arith.truncf %27 : vector<16x128xf32> to vector<16x128xbf16>
    %c0_13 = arith.constant 0 : index
    %c0_14 = arith.constant 0 : index
    %29 = vector.load %arg4[%c0_13, %c0_14] : memref<128x128xbf16, #tpu.memory_space<vmem>>, vector<128x128xbf16>
    %cst_15 = arith.constant dense<0.000000e+00> : vector<16x128xf32>
    %30 = tpu.matmul %28, %29, %cst_15 {dimension_numbers = #tpu.dot_dimension_numbers<[1], [0], [0], [1], [0, 0, 1, 1], [], []>} : vector<16x128xbf16>, vector<128x128xbf16>, vector<16x128xf32> -> vector<16x128xf32>
    %cst_16 = arith.constant dense<0.000000e+00> : vector<128xf32>
    %31 = vector.multi_reduction <add>, %30, %cst_16 [0] : vector<16x128xf32> to vector<128xf32>
    %32 = vector.shape_cast %31 : vector<128xf32> to vector<1x128xf32>
    %cst_17 = arith.constant 1.600000e+01 : f32
    %33 = vector.broadcast %cst_17 : f32 to vector<1x128xf32>
    %34 = arith.divf %32, %33 : vector<1x128xf32>
    %35 = vector.broadcast %34 : vector<1x128xf32> to vector<16x128xf32>
    %36 = arith.subf %30, %35 : vector<16x128xf32>
    %37 = arith.mulf %36, %36 : vector<16x128xf32>
    %cst_18 = arith.constant dense<0.000000e+00> : vector<128xf32>
    %38 = vector.multi_reduction <add>, %37, %cst_18 [0] : vector<16x128xf32> to vector<128xf32>
    %39 = vector.shape_cast %38 : vector<128xf32> to vector<1x128xf32>
    %cst_19 = arith.constant 1.600000e+01 : f32
    %40 = vector.broadcast %cst_19 : f32 to vector<1x128xf32>
    %41 = arith.divf %39, %40 : vector<1x128xf32>
    %c0_20 = arith.constant 0 : index
    %c0_21 = arith.constant 0 : index
    %42 = vector.load %arg5[%c0_20, %c0_21] : memref<1x128xf32, #tpu.memory_space<vmem>>, vector<1x128xf32>
    %cst_22 = arith.constant 1.000000e-03 : f32
    %43 = vector.broadcast %cst_22 : f32 to vector<1x128xf32>
    %44 = arith.addf %41, %43 : vector<1x128xf32>
    %45 = math.rsqrt %44 : vector<1x128xf32>
    %46 = arith.mulf %42, %45 : vector<1x128xf32>
    %47 = vector.broadcast %46 : vector<1x128xf32> to vector<16x128xf32>
    %48 = arith.mulf %36, %47 : vector<16x128xf32>
    %c0_23 = arith.constant 0 : index
    %c0_24 = arith.constant 0 : index
    %49 = vector.load %arg6[%c0_23, %c0_24] : memref<1x128xf32, #tpu.memory_space<vmem>>, vector<1x128xf32>
    %50 = vector.broadcast %49 : vector<1x128xf32> to vector<16x128xf32>
    %51 = arith.addf %48, %50 : vector<16x128xf32>
    %cst_25 = arith.constant 0.000000e+00 : f32
    %52 = vector.broadcast %cst_25 : f32 to vector<16x128xf32>
    %53 = arith.maximumf %51, %52 : vector<16x128xf32>
    %54 = arith.truncf %53 : vector<16x128xf32> to vector<16x128xbf16>
    %c0_26 = arith.constant 0 : index
    %c0_27 = arith.constant 0 : index
    %55 = vector.load %arg7[%c0_26, %c0_27] : memref<128x128xbf16, #tpu.memory_space<vmem>>, vector<128x128xbf16>
    %cst_28 = arith.constant dense<0.000000e+00> : vector<16x128xf32>
    %56 = tpu.matmul %54, %55, %cst_28 {dimension_numbers = #tpu.dot_dimension_numbers<[1], [0], [0], [1], [0, 0, 1, 1], [], []>} : vector<16x128xbf16>, vector<128x128xbf16>, vector<16x128xf32> -> vector<16x128xf32>
    %cst_29 = arith.constant dense<0.000000e+00> : vector<128xf32>
    %57 = vector.multi_reduction <add>, %56, %cst_29 [0] : vector<16x128xf32> to vector<128xf32>
    %58 = vector.shape_cast %57 : vector<128xf32> to vector<1x128xf32>
    %cst_30 = arith.constant 1.600000e+01 : f32
    %59 = vector.broadcast %cst_30 : f32 to vector<1x128xf32>
    %60 = arith.divf %58, %59 : vector<1x128xf32>
    %61 = vector.broadcast %60 : vector<1x128xf32> to vector<16x128xf32>
    %62 = arith.subf %56, %61 : vector<16x128xf32>
    %63 = arith.mulf %62, %62 : vector<16x128xf32>
    %cst_31 = arith.constant dense<0.000000e+00> : vector<128xf32>
    %64 = vector.multi_reduction <add>, %63, %cst_31 [0] : vector<16x128xf32> to vector<128xf32>
    %65 = vector.shape_cast %64 : vector<128xf32> to vector<1x128xf32>
    %cst_32 = arith.constant 1.600000e+01 : f32
    %66 = vector.broadcast %cst_32 : f32 to vector<1x128xf32>
    %67 = arith.divf %65, %66 : vector<1x128xf32>
    %c0_33 = arith.constant 0 : index
    %c0_34 = arith.constant 0 : index
    %68 = vector.load %arg8[%c0_33, %c0_34] : memref<1x128xf32, #tpu.memory_space<vmem>>, vector<1x128xf32>
    %cst_35 = arith.constant 1.000000e-03 : f32
    %69 = vector.broadcast %cst_35 : f32 to vector<1x128xf32>
    %70 = arith.addf %67, %69 : vector<1x128xf32>
    %71 = math.rsqrt %70 : vector<1x128xf32>
    %72 = arith.mulf %68, %71 : vector<1x128xf32>
    %73 = vector.broadcast %72 : vector<1x128xf32> to vector<16x128xf32>
    %74 = arith.mulf %62, %73 : vector<16x128xf32>
    %c0_36 = arith.constant 0 : index
    %c0_37 = arith.constant 0 : index
    %75 = vector.load %arg9[%c0_36, %c0_37] : memref<1x128xf32, #tpu.memory_space<vmem>>, vector<1x128xf32>
    %76 = vector.broadcast %75 : vector<1x128xf32> to vector<16x128xf32>
    %77 = arith.addf %74, %76 : vector<16x128xf32>
    %cst_38 = arith.constant 0.000000e+00 : f32
    %78 = vector.broadcast %cst_38 : f32 to vector<16x128xf32>
    %79 = arith.maximumf %77, %78 : vector<16x128xf32>
    %80 = arith.truncf %79 : vector<16x128xf32> to vector<16x128xbf16>
    %c0_39 = arith.constant 0 : index
    %c0_40 = arith.constant 0 : index
    %81 = vector.load %arg10[%c0_39, %c0_40] : memref<128x256xbf16, #tpu.memory_space<vmem>>, vector<128x256xbf16>
    %cst_41 = arith.constant dense<0.000000e+00> : vector<16x256xf32>
    %82 = tpu.matmul %80, %81, %cst_41 {dimension_numbers = #tpu.dot_dimension_numbers<[1], [0], [0], [1], [0, 0, 1, 1], [], []>} : vector<16x128xbf16>, vector<128x256xbf16>, vector<16x256xf32> -> vector<16x256xf32>
    %c0_42 = arith.constant 0 : index
    %c0_43 = arith.constant 0 : index
    %83 = vector.load %arg11[%c0_42, %c0_43] : memref<1x256xf32, #tpu.memory_space<vmem>>, vector<1x256xf32>
    %84 = vector.broadcast %83 : vector<1x256xf32> to vector<16x256xf32>
    %85 = arith.addf %82, %84 : vector<16x256xf32>
    %86 = vector.extract_strided_slice %85 {offsets = [0, 0], sizes = [16, 128], strides = [1, 1]} : vector<16x256xf32> to vector<16x128xf32>
    %87 = vector.extract_strided_slice %85 {offsets = [0, 128], sizes = [16, 128], strides = [1, 1]} : vector<16x256xf32> to vector<16x128xf32>
    %cst_44 = arith.constant -4.000000e+00 : f32
    %cst_45 = arith.constant 4.000000e+00 : f32
    %88 = vector.broadcast %cst_44 : f32 to vector<16x128xf32>
    %89 = arith.maximumf %88, %87 : vector<16x128xf32>
    %90 = vector.broadcast %cst_45 : f32 to vector<16x128xf32>
    %91 = arith.minimumf %90, %89 : vector<16x128xf32>
    %cst_46 = arith.constant 2.500000e-01 : f32
    %92 = vector.broadcast %cst_46 : f32 to vector<16x128xf32>
    %93 = arith.mulf %92, %91 : vector<16x128xf32>
    %94 = math.exp %93 : vector<16x128xf32>
    %95 = arith.mulf %94, %94 : vector<16x128xf32>
    %c0_47 = arith.constant 0 : index
    %c0_48 = arith.constant 0 : index
    %96 = vector.load %arg13[%c0_47, %c0_48] : memref<16x128xf32, #tpu.memory_space<vmem>>, vector<16x128xf32>
    tpu.vector_store %arg13[%c0_47, %c0_48], %86 {strides = array<i32>} : memref<16x128xf32, #tpu.memory_space<vmem>>, vector<16x128xf32>,
    %c0_49 = arith.constant 0 : index
    %c0_50 = arith.constant 0 : index
    %97 = vector.load %arg14[%c0_49, %c0_50] : memref<16x128xf32, #tpu.memory_space<vmem>>, vector<16x128xf32>
    tpu.vector_store %arg14[%c0_49, %c0_50], %95 {strides = array<i32>} : memref<16x128xf32, #tpu.memory_space<vmem>>, vector<16x128xf32>,
    %c0_51 = arith.constant 0 : index
    %c0_52 = arith.constant 0 : index
    %98 = vector.load %arg12[%c0_51, %c0_52] : memref<16x128xf32, #tpu.memory_space<vmem>>, vector<16x128xf32>
    %99 = arith.mulf %94, %98 : vector<16x128xf32>
    %100 = arith.addf %86, %99 : vector<16x128xf32>
    %c0_53 = arith.constant 0 : index
    %c0_54 = arith.constant 0 : index
    %101 = vector.load %arg15[%c0_53, %c0_54] : memref<16x128xf32, #tpu.memory_space<vmem>>, vector<16x128xf32>
    tpu.vector_store %arg15[%c0_53, %c0_54], %100 {strides = array<i32>} : memref<16x128xf32, #tpu.memory_space<vmem>>, vector<16x128xf32>,
    return
  }
}

</mosaic_0001>

<llo_original>
// kernel: tpu_custom_call.1
$region0: #{tpu_custom_call.1}
  #allocation0 [shape = 'u32[]', space=smem, size = 0x4, offset = 0x4, fixed_abs, tag = 'smem constant byte address 0x4 - core index']
  #allocation1 [shape = 'u32[144,128]{1,0:T(1,128)}', space=vmem, size = 0x12000, scoped, tag = 'internal scratch']
  %s0 = inlined_call_operand.hbm [shape: f32[16,256], index: 0, kind: input, shape index: {}]
  %s1 = inlined_call_operand.hbm [shape: bf16[256,128], index: 1, kind: input, shape index: {}]
  %s2 = inlined_call_operand.vmem [shape: f32[1,128], index: 2, kind: input, shape index: {}]
  %s3 = inlined_call_operand.vmem [shape: f32[1,128], index: 3, kind: input, shape index: {}]
  %s4 = inlined_call_operand.hbm [shape: bf16[128,128], index: 4, kind: input, shape index: {}]
  %s5 = inlined_call_operand.vmem [shape: f32[1,128], index: 5, kind: input, shape index: {}]
  %s6 = inlined_call_operand.hbm [shape: f32[1,128], index: 6, kind: input, shape index: {}]
  %s7 = inlined_call_operand.hbm [shape: bf16[128,128], index: 7, kind: input, shape index: {}]
  %s8 = inlined_call_operand.hbm [shape: f32[1,128], index: 8, kind: input, shape index: {}]
  %s9 = inlined_call_operand.hbm [shape: f32[1,128], index: 9, kind: input, shape index: {}]
  %s10 = inlined_call_operand.hbm [shape: bf16[128,256], index: 10, kind: input, shape index: {}]
  %s11 = inlined_call_operand.vmem [shape: f32[1,256], index: 11, kind: input, shape index: {}]
  %s12 = inlined_call_operand.vmem [shape: f32[16,128], index: 12, kind: input, shape index: {}]
  %s13 = inlined_call_operand.hbm [shape: f32[16,128], index: 13, kind: output, shape index: {0}]
  %s14 = inlined_call_operand.hbm [shape: f32[16,128], index: 14, kind: output, shape index: {1}]
  %s15 = inlined_call_operand.hbm [shape: f32[16,128], index: 15, kind: output, shape index: {2}]
  %16 = xla_tuple %s13, %s14, %s15
  %s17 = sld [smem:[#allocation0]]
  $region110: #{tpu_custom_call.1} parent=0
    _
  %s19 = ssub.s32 1, %s17
  %s20 = scalar_select 0, %s19, %s17
  $region1: #{tpu_custom_call.1} parent=0
    #allocation2 [shape = 'u8[16384]{0}', space=vmem, size = 0x4000, scoped, tag = 'input window, operand 0, single buffered']
    #allocation3 [shape = 's32[1]{0}', space=sflag, size = 0x4, scoped, tag = 'scoped memory for tpu_custom_call.1']
    #allocation4 [shape = 's32[1]{0}', space=sflag, size = 0x4, scoped, tag = 'scoped memory for tpu_custom_call.1']
    #allocation5 [shape = 'u8[65536]{0}', space=vmem, size = 0x10000, scoped, tag = 'input window, operand 1, single buffered']
    #allocation6 [shape = 's32[1]{0}', space=sflag, size = 0x4, scoped, tag = 'scoped memory for tpu_custom_call.1']
    #allocation7 [shape = 'u8[32768]{0}', space=vmem, size = 0x8000, scoped, tag = 'input window, operand 4, single buffered']
    #allocation8 [shape = 'u8[512]{0}', space=vmem, size = 0x400, scoped, tag = 'input window, operand 6, single buffered']
    #allocation9 [shape = 's32[1]{0}', space=sflag, size = 0x4, scoped, tag = 'scoped memory for tpu_custom_call.1']
    #allocation10 [shape = 'u8[32768]{0}', space=vmem, size = 0x8000, scoped, tag = 'input window, operand 7, single buffered']
    #allocation11 [shape = 'u8[512]{0}', space=vmem, size = 0x400, scoped, tag = 'input window, operand 8, single buffered']
    #allocation12 [shape = 's32[1]{0}', space=sflag, size = 0x4, scoped, tag = 'scoped memory for tpu_custom_call.1']
    #allocation13 [shape = 'u8[512]{0}', space=vmem, size = 0x400, scoped, tag = 'input window, operand 9, single buffered']
    #allocation14 [shape = 'u8[65536]{0}', space=vmem, size = 0x10000, scoped, tag = 'input window, operand 10, single buffered']
    #allocation15 [shape = 's32[1]{0}', space=sflag, size = 0x4, scoped, tag = 'scoped memory for tpu_custom_call.1']
    #allocation16 [shape = 'u8[8192]{0}', space=vmem, size = 0x2000, scoped, tag = 'output window, operand 0, single buffered']
    #allocation17 [shape = 'u8[8192]{0}', space=vmem, size = 0x2000, scoped, tag = 'output window, operand 1, single buffered']
    #allocation18 [shape = 's32[1]{0}', space=sflag, size = 0x4, scoped, tag = 'scoped memory for tpu_custom_call.1']
    #allocation19 [shape = 'u8[8192]{0}', space=vmem, size = 0x2000, scoped, tag = 'output window, operand 2, single buffered']
    %21 = vsyncpa [#allocation3], 0
    %22 = vsyncpa [#allocation6], 0
    %23 = vsyncpa [#allocation9], 0
    %24 = vsyncpa [#allocation12], 0
    %25 = vsyncpa [#allocation15], 0
    %26 = vsyncpa [#allocation4], 0
    %27 = vsyncpa [#allocation18], 0
    // Predicated region
    $region2: #{tpu_custom_call.1} parent=1 // pred_check
      _
    $region3: #{tpu_custom_call.1} parent=1 // pred_check_branch
      %29 = sbr.rel (0) target = $region5
    $region4: #{tpu_custom_call.1} parent=1 // pred_region
      %s31 = ssub.s32 512, 512
      %32 = vsyncadd [#allocation3], %s31
      %s33 = sshll.u32 [#allocation2], 4
      %s34 = int_to_ptr.vmem [resolvable:$true] %s33
      %39 = dma.hbm_to_vmem [thread:$0]  %s0, 512, %s34, [#allocation3], 256, 256, 16
    $region5: #{tpu_custom_call.1} parent=1 // pred_fallthru
      _
    // Predicated region
    $region6: #{tpu_custom_call.1} parent=1 // pred_check
      _
    $region7: #{tpu_custom_call.1} parent=1 // pred_check_branch
      %41 = sbr.rel (0) target = $region9
    $region8: #{tpu_custom_call.1} parent=1 // pred_region
      %s43 = ssub.s32 2048, 2048
      %44 = vsyncadd [#allocation6], %s43
      %s45 = sshll.u32 [#allocation5], 4
      %s46 = int_to_ptr.vmem [resolvable:$true] %s45
      %51 = dma.hbm_to_vmem [thread:$0]  %s1, 2048, %s46, [#allocation6], 64, 64, 4
    $region9: #{tpu_custom_call.1} parent=1 // pred_fallthru
      _
    // Predicated region
    $region10: #{tpu_custom_call.1} parent=1 // pred_check
      _
    $region11: #{tpu_custom_call.1} parent=1 // pred_check_branch
      %53 = sbr.rel (0) target = $region13
    $region12: #{tpu_custom_call.1} parent=1 // pred_region
      _
    $region13: #{tpu_custom_call.1} parent=1 // pred_fallthru
      _
    // Predicated region
    $region14: #{tpu_custom_call.1} parent=1 // pred_check
      _
    $region15: #{tpu_custom_call.1} parent=1 // pred_check_branch
      %55 = sbr.rel (0) target = $region17
    $region16: #{tpu_custom_call.1} parent=1 // pred_region
      _
    $region17: #{tpu_custom_call.1} parent=1 // pred_fallthru
      _
    // Predicated region
    $region18: #{tpu_custom_call.1} parent=1 // pred_check
      _
    $region19: #{tpu_custom_call.1} parent=1 // pred_check_branch
      %57 = sbr.rel (0) target = $region21
    $region20: #{tpu_custom_call.1} parent=1 // pred_region
      %s59 = ssub.s32 1024, 1024
      %60 = vsyncadd [#allocation6], %s59
      %s61 = sshll.u32 [#allocation7], 4
      %s62 = int_to_ptr.vmem [resolvable:$true] %s61
      %67 = dma.hbm_to_vmem [thread:$0]  %s4, 1024, %s62, [#allocation6], 64, 64, 4
    $region21: #{tpu_custom_call.1} parent=1 // pred_fallthru
      _
    // Predicated region
    $region22: #{tpu_custom_call.1} parent=1 // pred_check
      _
    $region23: #{tpu_custom_call.1} parent=1 // pred_check_branch
      %69 = sbr.rel (0) target = $region25
    $region24: #{tpu_custom_call.1} parent=1 // pred_region
      _
    $region25: #{tpu_custom_call.1} parent=1 // pred_fallthru
      _
    // Predicated region
    $region26: #{tpu_custom_call.1} parent=1 // pred_check
      _
    $region27: #{tpu_custom_call.1} parent=1 // pred_check_branch
      %71 = sbr.rel (0) target = $region29
    $region28: #{tpu_custom_call.1} parent=1 // pred_region
      %s73 = ssub.s32 16, 16
      %74 = vsyncadd [#allocation9], %s73
      %s76 = sshll.u32 [#allocation8], 4
      %s77 = int_to_ptr.vmem [resolvable:$true] %s76
      %79 = dma.hbm_to_vmem [thread:$0]  %s6, 16, %s77, [#allocation9]
    $region29: #{tpu_custom_call.1} parent=1 // pred_fallthru
      _
    // Predicated region
    $region30: #{tpu_custom_call.1} parent=1 // pred_check
      _
    $region31: #{tpu_custom_call.1} parent=1 // pred_check_branch
      %81 = sbr.rel (0) target = $region33
    $region32: #{tpu_custom_call.1} parent=1 // pred_region
      %s83 = ssub.s32 1024, 1024
      %84 = vsyncadd [#allocation9], %s83
      %s85 = sshll.u32 [#allocation10], 4
      %s86 = int_to_ptr.vmem [resolvable:$true] %s85
      %91 = dma.hbm_to_vmem [thread:$0]  %s7, 1024, %s86, [#allocation9], 64, 64, 4
    $region33: #{tpu_custom_call.1} parent=1 // pred_fallthru
      _
    // Predicated region
    $region34: #{tpu_custom_call.1} parent=1 // pred_check
      _
    $region35: #{tpu_custom_call.1} parent=1 // pred_check_branch
      %93 = sbr.rel (0) target = $region37
    $region36: #{tpu_custom_call.1} parent=1 // pred_region
      %s95 = ssub.s32 16, 16
      %96 = vsyncadd [#allocation12], %s95
      %s98 = sshll.u32 [#allocation11], 4
      %s99 = int_to_ptr.vmem [resolvable:$true] %s98
      %101 = dma.hbm_to_vmem [thread:$0]  %s8, 16, %s99, [#allocation12]
    $region37: #{tpu_custom_call.1} parent=1 // pred_fallthru
      _
    // Predicated region
    $region38: #{tpu_custom_call.1} parent=1 // pred_check
      _
    $region39: #{tpu_custom_call.1} parent=1 // pred_check_branch
      %103 = sbr.rel (0) target = $region41
    $region40: #{tpu_custom_call.1} parent=1 // pred_region
      %s105 = ssub.s32 16, 16
      %106 = vsyncadd [#allocation12], %s105
      %s108 = sshll.u32 [#allocation13], 4
      %s109 = int_to_ptr.vmem [resolvable:$true] %s108
      %111 = dma.hbm_to_vmem [thread:$0]  %s9, 16, %s109, [#allocation12]
    $region41: #{tpu_custom_call.1} parent=1 // pred_fallthru
      _
    // Predicated region
    $region42: #{tpu_custom_call.1} parent=1 // pred_check
      _
    $region43: #{tpu_custom_call.1} parent=1 // pred_check_branch
      %113 = sbr.rel (0) target = $region45
    $region44: #{tpu_custom_call.1} parent=1 // pred_region
      %s115 = ssub.s32 2048, 2048
      %116 = vsyncadd [#allocation15], %s115
      %s117 = sshll.u32 [#allocation14], 4
      %s118 = int_to_ptr.vmem [resolvable:$true] %s117
      %123 = dma.hbm_to_vmem [thread:$0]  %s10, 2048, %s118, [#allocation15], 128, 128, 8
    $region45: #{tpu_custom_call.1} parent=1 // pred_fallthru
      _
    // Predicated region
    $region46: #{tpu_custom_call.1} parent=1 // pred_check
      _
    $region47: #{tpu_custom_call.1} parent=1 // pred_check_branch
      %125 = sbr.rel (0) target = $region49
    $region48: #{tpu_custom_call.1} parent=1 // pred_region
      _
    $region49: #{tpu_custom_call.1} parent=1 // pred_fallthru
      _
    // Predicated region
    $region50: #{tpu_custom_call.1} parent=1 // pred_check
      _
    $region51: #{tpu_custom_call.1} parent=1 // pred_check_branch
      %127 = sbr.rel (0) target = $region53
    $region52: #{tpu_custom_call.1} parent=1 // pred_region
      _
    $region53: #{tpu_custom_call.1} parent=1 // pred_fallthru
      _
    // Predicated region
    $region54: #{tpu_custom_call.1} parent=1 // pred_check
      _
    $region55: #{tpu_custom_call.1} parent=1 // pred_check_branch
      %129 = sbr.rel (0) target = $region57
    $region56: #{tpu_custom_call.1} parent=1 // pred_region
      %130 = dma.done [#allocation3], 512
    $region57: #{tpu_custom_call.1} parent=1 // pred_fallthru
      _
    // Predicated region
    $region58: #{tpu_custom_call.1} parent=1 // pred_check
      _
    $region59: #{tpu_custom_call.1} parent=1 // pred_check_branch
      %132 = sbr.rel (0) target = $region61
    $region60: #{tpu_custom_call.1} parent=1 // pred_region
      %133 = dma.done [#allocation6], 2048
    $region61: #{tpu_custom_call.1} parent=1 // pred_fallthru
      _
    // Predicated region
    $region62: #{tpu_custom_call.1} parent=1 // pred_check
      _
    $region63: #{tpu_custom_call.1} parent=1 // pred_check_branch
      %135 = sbr.rel (0) target = $region65
    $region64: #{tpu_custom_call.1} parent=1 // pred_region
      %136 = dma.done [#allocation6], 1024
    $region65: #{tpu_custom_call.1} parent=1 // pred_fallthru
      _
    // Predicated region
    $region66: #{tpu_custom_call.1} parent=1 // pred_check
      _
    $region67: #{tpu_custom_call.1} parent=1 // pred_check_branch
      %138 = sbr.rel (0) target = $region69
    $region68: #{tpu_custom_call.1} parent=1 // pred_region
      %139 = dma.done [#allocation9], 16
    $region69: #{tpu_custom_call.1} parent=1 // pred_fallthru
      _
    // Predicated region
    $region70: #{tpu_custom_call.1} parent=1 // pred_check
      _
    $region71: #{tpu_custom_call.1} parent=1 // pred_check_branch
      %141 = sbr.rel (0) target = $region73
    $region72: #{tpu_custom_call.1} parent=1 // pred_region
      %142 = dma.done [#allocation9], 1024
    $region73: #{tpu_custom_call.1} parent=1 // pred_fallthru
      _
    // Predicated region
    $region74: #{tpu_custom_call.1} parent=1 // pred_check
      _
    $region75: #{tpu_custom_call.1} parent=1 // pred_check_branch
      %144 = sbr.rel (0) target = $region77
    $region76: #{tpu_custom_call.1} parent=1 // pred_region
      %145 = dma.done [#allocation12], 16
    $region77: #{tpu_custom_call.1} parent=1 // pred_fallthru
      _
    // Predicated region
    $region78: #{tpu_custom_call.1} parent=1 // pred_check
      _
    $region79: #{tpu_custom_call.1} parent=1 // pred_check_branch
      %147 = sbr.rel (0) target = $region81
    $region80: #{tpu_custom_call.1} parent=1 // pred_region
      %148 = dma.done [#allocation12], 16
    $region81: #{tpu_custom_call.1} parent=1 // pred_fallthru
      _
    // Predicated region
    $region82: #{tpu_custom_call.1} parent=1 // pred_check
      _
    $region83: #{tpu_custom_call.1} parent=1 // pred_check_branch
      %150 = sbr.rel (0) target = $region85
    $region84: #{tpu_custom_call.1} parent=1 // pred_region
      %151 = dma.done [#allocation15], 2048
    $region85: #{tpu_custom_call.1} parent=1 // pred_fallthru
      _
    %v153 = vld [vmem:[#allocation2] sm:$0xff]
    %v154 = vld [vmem:[#allocation2 + $0x8] sm:$0xff]
    %v155 = vld [vmem:[#allocation2 + $0x10] sm:$0xff]
    %v156 = vld [vmem:[#allocation2 + $0x18] sm:$0xff]
    %v157 = vadd.f32 %v153, 1.0
    %v158 = vlog2.pop %v157
    %v159 = vmul.f32 %v158, 0.6931472
    %v160 = vmul.f32 -0.5, %v153
    %v161 = vadd.f32 %v160, 1.0
    %v162 = vmul.f32 %v161, %v153
    %v163 = vand.u32 2147483647, %v153
    %vm164 = vcmp.lt.f32.partialorder %v163, 0.0004427343
    %v165 = vsel %vm164, %v162, %v159
    %v166 = vadd.f32 %v154, 1.0
    %v167 = vlog2.pop %v166
    %v168 = vmul.f32 %v167, 0.6931472
    %v169 = vmul.f32 -0.5, %v154
    %v170 = vadd.f32 %v169, 1.0
    %v171 = vmul.f32 %v170, %v154
    %v172 = vand.u32 2147483647, %v154
    %vm173 = vcmp.lt.f32.partialorder %v172, 0.0004427343
    %v174 = vsel %vm173, %v171, %v168
    %v175 = vadd.f32 %v155, 1.0
    %v176 = vlog2.pop %v175
    %v177 = vmul.f32 %v176, 0.6931472
    %v178 = vmul.f32 -0.5, %v155
    %v179 = vadd.f32 %v178, 1.0
    %v180 = vmul.f32 %v179, %v155
    %v181 = vand.u32 2147483647, %v155
    %vm182 = vcmp.lt.f32.partialorder %v181, 0.0004427343
    %v183 = vsel %vm182, %v180, %v177
    %v184 = vadd.f32 %v156, 1.0
    %v185 = vlog2.pop %v184
    %v186 = vmul.f32 %v185, 0.6931472
    %v187 = vmul.f32 -0.5, %v156
    %v188 = vadd.f32 %v187, 1.0
    %v189 = vmul.f32 %v188, %v156
    %v190 = vand.u32 2147483647, %v156
    %vm191 = vcmp.lt.f32.partialorder %v190, 0.0004427343
    %v192 = vsel %vm191, %v189, %v186
    %v193 = vpack.c.bf16 %v183, %v165
    %v194 = vpack.c.bf16 %v192, %v174
    %v195 = vld [vmem:[#allocation5] sm:$0xf]
    %v196 = vld [vmem:[#allocation5 + $0x4] sm:$0xf]
    %v197 = vld [vmem:[#allocation5 + $0x8] sm:$0xf]
    %v198 = vld [vmem:[#allocation5 + $0xc] sm:$0xf]
    %v199 = vld [vmem:[#allocation5 + $0x10] sm:$0xf]
    %v200 = vld [vmem:[#allocation5 + $0x14] sm:$0xf]
    %v201 = vld [vmem:[#allocation5 + $0x18] sm:$0xf]
    %v202 = vld [vmem:[#allocation5 + $0x1c] sm:$0xf]
    %v203 = vld [vmem:[#allocation5 + $0x20] sm:$0xf]
    %v204 = vld [vmem:[#allocation5 + $0x24] sm:$0xf]
    %v205 = vld [vmem:[#allocation5 + $0x28] sm:$0xf]
    %v206 = vld [vmem:[#allocation5 + $0x2c] sm:$0xf]
    %v207 = vld [vmem:[#allocation5 + $0x30] sm:$0xf]
    %v208 = vld [vmem:[#allocation5 + $0x34] sm:$0xf]
    %v209 = vld [vmem:[#allocation5 + $0x38] sm:$0xf]
    %v210 = vld [vmem:[#allocation5 + $0x3c] sm:$0xf]
    %v211 = vld [vmem:[#allocation5 + $0x40] sm:$0xf]
    %v212 = vld [vmem:[#allocation5 + $0x44] sm:$0xf]
    %v213 = vld [vmem:[#allocation5 + $0x48] sm:$0xf]
    %v214 = vld [vmem:[#allocation5 + $0x4c] sm:$0xf]
    %v215 = vld [vmem:[#allocation5 + $0x50] sm:$0xf]
    %v216 = vld [vmem:[#allocation5 + $0x54] sm:$0xf]
    %v217 = vld [vmem:[#allocation5 + $0x58] sm:$0xf]
    %v218 = vld [vmem:[#allocation5 + $0x5c] sm:$0xf]
    %v219 = vld [vmem:[#allocation5 + $0x60] sm:$0xf]
    %v220 = vld [vmem:[#allocation5 + $0x64] sm:$0xf]
    %v221 = vld [vmem:[#allocation5 + $0x68] sm:$0xf]
    %v222 = vld [vmem:[#allocation5 + $0x6c] sm:$0xf]
    %v223 = vld [vmem:[#allocation5 + $0x70] sm:$0xf]
    %v224 = vld [vmem:[#allocation5 + $0x74] sm:$0xf]
    %v225 = vld [vmem:[#allocation5 + $0x78] sm:$0xf]
    %v226 = vld [vmem:[#allocation5 + $0x7c] sm:$0xf]
    %v259 = vunpack.c.l.b16 %v195
    %v260 = vunpack.c.l.b16 %v196
    %v261 = vunpack.c.l.b16 %v197
    %v262 = vunpack.c.l.b16 %v198
    %v263 = vunpack.c.l.b16 %v199
    %v264 = vunpack.c.l.b16 %v200
    %v265 = vunpack.c.l.b16 %v201
    %v266 = vunpack.c.l.b16 %v202
    %v267 = vunpack.c.l.b16 %v203
    %v268 = vunpack.c.l.b16 %v204
    %v269 = vunpack.c.l.b16 %v205
    %v270 = vunpack.c.l.b16 %v206
    %v271 = vunpack.c.l.b16 %v207
    %v272 = vunpack.c.l.b16 %v208
    %v273 = vunpack.c.l.b16 %v209
    %v274 = vunpack.c.l.b16 %v210
    %v275 = vunpack.c.l.b16 %v211
    %v276 = vunpack.c.l.b16 %v212
    %v277 = vunpack.c.l.b16 %v213
    %v278 = vunpack.c.l.b16 %v214
    %v279 = vunpack.c.l.b16 %v215
    %v280 = vunpack.c.l.b16 %v216
    %v281 = vunpack.c.l.b16 %v217
    %v282 = vunpack.c.l.b16 %v218
    %v283 = vunpack.c.l.b16 %v219
    %v284 = vunpack.c.l.b16 %v220
    %v285 = vunpack.c.l.b16 %v221
    %v286 = vunpack.c.l.b16 %v222
    %v287 = vunpack.c.l.b16 %v223
    %v288 = vunpack.c.l.b16 %v224
    %v289 = vunpack.c.l.b16 %v225
    %v290 = vunpack.c.l.b16 %v226
    %v291 = vpack.c.b16 %v260, %v259
    %v292 = vpack.c.b16 %v262, %v261
    %v293 = vpack.c.b16 %v264, %v263
    %v294 = vpack.c.b16 %v266, %v265
    %v295 = vpack.c.b16 %v268, %v267
    %v296 = vpack.c.b16 %v270, %v269
    %v297 = vpack.c.b16 %v272, %v271
    %v298 = vpack.c.b16 %v274, %v273
    %v299 = vpack.c.b16 %v276, %v275
    %v300 = vpack.c.b16 %v278, %v277
    %v301 = vpack.c.b16 %v280, %v279
    %v302 = vpack.c.b16 %v282, %v281
    %v303 = vpack.c.b16 %v284, %v283
    %v304 = vpack.c.b16 %v286, %v285
    %v305 = vpack.c.b16 %v288, %v287
    %v306 = vpack.c.b16 %v290, %v289
    %323 = vmatprep.subr.bf16.mxu0 0
    %324 = vmatpush1.bf16.msra.mxu0 %v298
    %325 = vmatprep.subr.bf16.mxu0 0
    %326 = vmatpush1.bf16.msra.mxu0 %v297
    %327 = vmatprep.subr.bf16.mxu0 0
    %328 = vmatpush1.bf16.msra.mxu0 %v296
    %329 = vmatprep.subr.bf16.mxu0 0
    %330 = vmatpush1.bf16.msra.mxu0 %v295
    %331 = vmatprep.subr.bf16.mxu0 0
    %332 = vmatpush1.bf16.msra.mxu0 %v294
    %333 = vmatprep.subr.bf16.mxu0 0
    %334 = vmatpush1.bf16.msra.mxu0 %v293
    %335 = vmatprep.subr.bf16.mxu0 0
    %336 = vmatpush1.bf16.msra.mxu0 %v292
    %337 = vmatprep.subr.bf16.mxu0 0
    %338 = vmatpush1.bf16.msra.mxu0 %v291
    %339 = vmatprep.subr.bf16.mxu0 0
    %340 = vmatpush2.bf16.msra.mxu0 %v306
    %341 = vmatprep.subr.bf16.mxu0 0
    %342 = vmatpush2.bf16.msra.mxu0 %v305
    %343 = vmatprep.subr.bf16.mxu0 0
    %344 = vmatpush2.bf16.msra.mxu0 %v304
    %345 = vmatprep.subr.bf16.mxu0 0
    %346 = vmatpush2.bf16.msra.mxu0 %v303
    %347 = vmatprep.subr.bf16.mxu0 0
    %348 = vmatpush2.bf16.msra.mxu0 %v302
    %349 = vmatprep.subr.bf16.mxu0 0
    %350 = vmatpush2.bf16.msra.mxu0 %v301
    %351 = vmatprep.subr.bf16.mxu0 0
    %352 = vmatpush2.bf16.msra.mxu0 %v300
    %353 = vmatprep.subr.bf16.mxu0 0
    %354 = vmatpush2.bf16.msra.mxu0 %v299
    %355 = vmatprep.mubr.bf16.mxu0 %v194
    %356 = vmatmul.mubr.bf16.gmra.mxu0 %v193
    %v357 = vpop.f32.mrf.mxu0
    %v358 = vadd.f32 0.0, %v357
    %v359 = vpop.f32.mrf.mxu0
    %v360 = vpop.f32.mrf.mxu0
    %v361 = vadd.f32 0.0, %v360
    %v362 = vpop.f32.mrf.mxu0
    %363 = vdwg.mxu0
    %v364 = vadd.f32 %v358, %v361
    %v365 = vrot.slane %v364, 4
    %v366 = vadd.f32 %v364, %v365
    %v367 = vrot.slane %v366, 2
    %v368 = vadd.f32 %v366, %v367
    %v369 = vrot.slane %v368, 1
    %v370 = vadd.f32 %v368, %v369
    %v371 = vrcp.pop 16.0
    %v372 = vmul.f32 %v370, %v371
    %v373 = vsub.f32 %v358, %v372
    %v374 = vsub.f32 %v361, %v372
    %v375 = vmul.f32 %v373, %v373
    %v376 = vmul.f32 %v374, %v374
    %v377 = vadd.f32 %v375, %v376
    %v378 = vrot.slane %v377, 4
    %v379 = vadd.f32 %v377, %v378
    %v380 = vrot.slane %v379, 2
    %v381 = vadd.f32 %v379, %v380
    %v382 = vrot.slane %v381, 1
    %v383 = vadd.f32 %v381, %v382
    %v384 = vmul.f32 %v383, %v371
    %v385 = vld [vmem:[%s2] sm:$0x1]
    %v386 = vadd.f32 %v384, 0.001
    %v387 = vrsqrt.pop %v386
    %v388 = vmul.f32 %v385, %v387
    %v390 = vlaneseq
    %v391 = vshrl.u32 %v390, 7
    %v392 = vsub.s32 0, %v391
    %v393 = vrot.slane %v388, %v392
    %v395 = vmul.f32 %v373, %v393
    %v396 = vmul.f32 %v374, %v393
    %v397 = vld [vmem:[%s3] sm:$0x1]
    %v399 = vlaneseq
    %v400 = vshrl.u32 %v399, 7
    %v401 = vsub.s32 0, %v400
    %v402 = vrot.slane %v397, %v401
    %v404 = vadd.f32 %v395, %v402
    %v405 = vadd.f32 %v396, %v402
    %v406 = vmax.f32 %v404, 0.0
    %v407 = vmax.f32 %v405, 0.0
    %v408 = vpack.c.bf16 %v407, %v406
    %v409 = vld [vmem:[#allocation7] sm:$0xf]
    %v410 = vld [vmem:[#allocation7 + $0x4] sm:$0xf]
    %v411 = vld [vmem:[#allocation7 + $0x8] sm:$0xf]
    %v412 = vld [vmem:[#allocation7 + $0xc] sm:$0xf]
    %v413 = vld [vmem:[#allocation7 + $0x10] sm:$0xf]
    %v414 = vld [vmem:[#allocation7 + $0x14] sm:$0xf]
    %v415 = vld [vmem:[#allocation7 + $0x18] sm:$0xf]
    %v416 = vld [vmem:[#allocation7 + $0x1c] sm:$0xf]
    %v417 = vld [vmem:[#allocation7 + $0x20] sm:$0xf]
    %v418 = vld [vmem:[#allocation7 + $0x24] sm:$0xf]
    %v419 = vld [vmem:[#allocation7 + $0x28] sm:$0xf]
    %v420 = vld [vmem:[#allocation7 + $0x2c] sm:$0xf]
    %v421 = vld [vmem:[#allocation7 + $0x30] sm:$0xf]
    %v422 = vld [vmem:[#allocation7 + $0x34] sm:$0xf]
    %v423 = vld [vmem:[#allocation7 + $0x38] sm:$0xf]
    %v424 = vld [vmem:[#allocation7 + $0x3c] sm:$0xf]
    %v441 = vunpack.c.l.b16 %v409
    %v442 = vunpack.c.l.b16 %v410
    %v443 = vunpack.c.l.b16 %v411
    %v444 = vunpack.c.l.b16 %v412
    %v445 = vunpack.c.l.b16 %v413
    %v446 = vunpack.c.l.b16 %v414
    %v447 = vunpack.c.l.b16 %v415
    %v448 = vunpack.c.l.b16 %v416
    %v449 = vunpack.c.l.b16 %v417
    %v450 = vunpack.c.l.b16 %v418
    %v451 = vunpack.c.l.b16 %v419
    %v452 = vunpack.c.l.b16 %v420
    %v453 = vunpack.c.l.b16 %v421
    %v454 = vunpack.c.l.b16 %v422
    %v455 = vunpack.c.l.b16 %v423
    %v456 = vunpack.c.l.b16 %v424
    %v457 = vpack.c.b16 %v442, %v441
    %v458 = vpack.c.b16 %v444, %v443
    %v459 = vpack.c.b16 %v446, %v445
    %v460 = vpack.c.b16 %v448, %v447
    %v461 = vpack.c.b16 %v450, %v449
    %v462 = vpack.c.b16 %v452, %v451
    %v463 = vpack.c.b16 %v454, %v453
    %v464 = vpack.c.b16 %v456, %v455
    %473 = vmatprep.subr.bf16.mxu0 0
    %474 = vmatpush1.bf16.msra.mxu0 %v464
    %475 = vmatprep.subr.bf16.mxu0 0
    %476 = vmatpush1.bf16.msra.mxu0 %v463
    %477 = vmatprep.subr.bf16.mxu0 0
    %478 = vmatpush1.bf16.msra.mxu0 %v462
    %479 = vmatprep.subr.bf16.mxu0 0
    %480 = vmatpush1.bf16.msra.mxu0 %v461
    %481 = vmatprep.subr.bf16.mxu0 0
    %482 = vmatpush1.bf16.msra.mxu0 %v460
    %483 = vmatprep.subr.bf16.mxu0 0
    %484 = vmatpush1.bf16.msra.mxu0 %v459
    %485 = vmatprep.subr.bf16.mxu0 0
    %486 = vmatpush1.bf16.msra.mxu0 %v458
    %487 = vmatprep.subr.bf16.mxu0 0
    %488 = vmatpush1.bf16.msra.mxu0 %v457
    %489 = vmatprep.subr.bf16.mxu0 0
    %490 = vmatpush2.bf16.msra.mxu0 0
    %491 = vmatprep.subr.bf16.mxu0 0
    %492 = vmatpush2.bf16.msra.mxu0 0
    %493 = vmatprep.subr.bf16.mxu0 0
    %494 = vmatpush2.bf16.msra.mxu0 0
    %495 = vmatprep.subr.bf16.mxu0 0
    %496 = vmatpush2.bf16.msra.mxu0 0
    %497 = vmatprep.subr.bf16.mxu0 0
    %498 = vmatpush2.bf16.msra.mxu0 0
    %499 = vmatprep.subr.bf16.mxu0 0
    %500 = vmatpush2.bf16.msra.mxu0 0
    %501 = vmatprep.subr.bf16.mxu0 0
    %502 = vmatpush2.bf16.msra.mxu0 0
    %503 = vmatprep.subr.bf16.mxu0 0
    %504 = vmatpush2.bf16.msra.mxu0 0
    %505 = vmatprep.mubr.bf16.mxu0 0
    %506 = vmatmul.mubr.bf16.gmra.mxu0 %v408
    %v507 = vpop.f32.mrf.mxu0
    %v508 = vadd.f32 0.0, %v507
    %v509 = vpop.f32.mrf.mxu0
    %v510 = vpop.f32.mrf.mxu0
    %v511 = vadd.f32 0.0, %v510
    %v512 = vpop.f32.mrf.mxu0
    %513 = vdwg.mxu0
    %v514 = vadd.f32 %v508, %v511
    %v515 = vrot.slane %v514, 4
    %v516 = vadd.f32 %v514, %v515
    %v517 = vrot.slane %v516, 2
    %v518 = vadd.f32 %v516, %v517
    %v519 = vrot.slane %v518, 1
    %v520 = vadd.f32 %v518, %v519
    %v521 = vmul.f32 %v520, %v371
    %v522 = vsub.f32 %v508, %v521
    %v523 = vsub.f32 %v511, %v521
    %v524 = vmul.f32 %v522, %v522
    %v525 = vmul.f32 %v523, %v523
    %v526 = vadd.f32 %v524, %v525
    %v527 = vrot.slane %v526, 4
    %v528 = vadd.f32 %v526, %v527
    %v529 = vrot.slane %v528, 2
    %v530 = vadd.f32 %v528, %v529
    %v531 = vrot.slane %v530, 1
    %v532 = vadd.f32 %v530, %v531
    %v533 = vmul.f32 %v532, %v371
    %v534 = vld [vmem:[%s5] sm:$0x1]
    %v535 = vadd.f32 %v533, 0.001
    %v536 = vrsqrt.pop %v535
    %v537 = vmul.f32 %v534, %v536
    %v539 = vlaneseq
    %v540 = vshrl.u32 %v539, 7
    %v541 = vsub.s32 0, %v540
    %v542 = vrot.slane %v537, %v541
    %v544 = vmul.f32 %v522, %v542
    %v545 = vmul.f32 %v523, %v542
    %v546 = vld [vmem:[#allocation8] sm:$0x1]
    %v548 = vlaneseq
    %v549 = vshrl.u32 %v548, 7
    %v550 = vsub.s32 0, %v549
    %v551 = vrot.slane %v546, %v550
    %v553 = vadd.f32 %v544, %v551
    %v554 = vadd.f32 %v545, %v551
    %v555 = vmax.f32 %v553, 0.0
    %v556 = vmax.f32 %v554, 0.0
    %v557 = vpack.c.bf16 %v556, %v555
    %v558 = vld [vmem:[#allocation10] sm:$0xf]
    %v559 = vld [vmem:[#allocation10 + $0x4] sm:$0xf]
    %v560 = vld [vmem:[#allocation10 + $0x8] sm:$0xf]
    %v561 = vld [vmem:[#allocation10 + $0xc] sm:$0xf]
    %v562 = vld [vmem:[#allocation10 + $0x10] sm:$0xf]
    %v563 = vld [vmem:[#allocation10 + $0x14] sm:$0xf]
    %v564 = vld [vmem:[#allocation10 + $0x18] sm:$0xf]
    %v565 = vld [vmem:[#allocation10 + $0x1c] sm:$0xf]
    %v566 = vld [vmem:[#allocation10 + $0x20] sm:$0xf]
    %v567 = vld [vmem:[#allocation10 + $0x24] sm:$0xf]
    %v568 = vld [vmem:[#allocation10 + $0x28] sm:$0xf]
    %v569 = vld [vmem:[#allocation10 + $0x2c] sm:$0xf]
    %v570 = vld [vmem:[#allocation10 + $0x30] sm:$0xf]
    %v571 = vld [vmem:[#allocation10 + $0x34] sm:$0xf]
    %v572 = vld [vmem:[#allocation10 + $0x38] sm:$0xf]
    %v573 = vld [vmem:[#allocation10 + $0x3c] sm:$0xf]
    %v590 = vunpack.c.l.b16 %v558
    %v591 = vunpack.c.l.b16 %v559
    %v592 = vunpack.c.l.b16 %v560
    %v593 = vunpack.c.l.b16 %v561
    %v594 = vunpack.c.l.b16 %v562
    %v595 = vunpack.c.l.b16 %v563
    %v596 = vunpack.c.l.b16 %v564
    %v597 = vunpack.c.l.b16 %v565
    %v598 = vunpack.c.l.b16 %v566
    %v599 = vunpack.c.l.b16 %v567
    %v600 = vunpack.c.l.b16 %v568
    %v601 = vunpack.c.l.b16 %v569
    %v602 = vunpack.c.l.b16 %v570
    %v603 = vunpack.c.l.b16 %v571
    %v604 = vunpack.c.l.b16 %v572
    %v605 = vunpack.c.l.b16 %v573
    %v606 = vpack.c.b16 %v591, %v590
    %v607 = vpack.c.b16 %v593, %v592
    %v608 = vpack.c.b16 %v595, %v594
    %v609 = vpack.c.b16 %v597, %v596
    %v610 = vpack.c.b16 %v599, %v598
    %v611 = vpack.c.b16 %v601, %v600
    %v612 = vpack.c.b16 %v603, %v602
    %v613 = vpack.c.b16 %v605, %v604
    %622 = vmatprep.subr.bf16.mxu0 0
    %623 = vmatpush1.bf16.msra.mxu0 %v613
    %624 = vmatprep.subr.bf16.mxu0 0
    %625 = vmatpush1.bf16.msra.mxu0 %v612
    %626 = vmatprep.subr.bf16.mxu0 0
    %627 = vmatpush1.bf16.msra.mxu0 %v611
    %628 = vmatprep.subr.bf16.mxu0 0
    %629 = vmatpush1.bf16.msra.mxu0 %v610
    %630 = vmatprep.subr.bf16.mxu0 0
    %631 = vmatpush1.bf16.msra.mxu0 %v609
    %632 = vmatprep.subr.bf16.mxu0 0
    %633 = vmatpush1.bf16.msra.mxu0 %v608
    %634 = vmatprep.subr.bf16.mxu0 0
    %635 = vmatpush1.bf16.msra.mxu0 %v607
    %636 = vmatprep.subr.bf16.mxu0 0
    %637 = vmatpush1.bf16.msra.mxu0 %v606
    %638 = vmatprep.subr.bf16.mxu0 0
    %639 = vmatpush2.bf16.msra.mxu0 0
    %640 = vmatprep.subr.bf16.mxu0 0
    %641 = vmatpush2.bf16.msra.mxu0 0
    %642 = vmatprep.subr.bf16.mxu0 0
    %643 = vmatpush2.bf16.msra.mxu0 0
    %644 = vmatprep.subr.bf16.mxu0 0
    %645 = vmatpush2.bf16.msra.mxu0 0
    %646 = vmatprep.subr.bf16.mxu0 0
    %647 = vmatpush2.bf16.msra.mxu0 0
    %648 = vmatprep.subr.bf16.mxu0 0
    %649 = vmatpush2.bf16.msra.mxu0 0
    %650 = vmatprep.subr.bf16.mxu0 0
    %651 = vmatpush2.bf16.msra.mxu0 0
    %652 = vmatprep.subr.bf16.mxu0 0
    %653 = vmatpush2.bf16.msra.mxu0 0
    %654 = vmatprep.mubr.bf16.mxu0 0
    %655 = vmatmul.mubr.bf16.gmra.mxu0 %v557
    %v656 = vpop.f32.mrf.mxu0
    %v657 = vadd.f32 0.0, %v656
    %v658 = vpop.f32.mrf.mxu0
    %v659 = vpop.f32.mrf.mxu0
    %v660 = vadd.f32 0.0, %v659
    %v661 = vpop.f32.mrf.mxu0
    %662 = vdwg.mxu0
    %v663 = vadd.f32 %v657, %v660
    %v664 = vrot.slane %v663, 4
    %v665 = vadd.f32 %v663, %v664
    %v666 = vrot.slane %v665, 2
    %v667 = vadd.f32 %v665, %v666
    %v668 = vrot.slane %v667, 1
    %v669 = vadd.f32 %v667, %v668
    %v670 = vmul.f32 %v669, %v371
    %v671 = vsub.f32 %v657, %v670
    %v672 = vsub.f32 %v660, %v670
    %v673 = vmul.f32 %v671, %v671
    %v674 = vmul.f32 %v672, %v672
    %v675 = vadd.f32 %v673, %v674
    %v676 = vrot.slane %v675, 4
    %v677 = vadd.f32 %v675, %v676
    %v678 = vrot.slane %v677, 2
    %v679 = vadd.f32 %v677, %v678
    %v680 = vrot.slane %v679, 1
    %v681 = vadd.f32 %v679, %v680
    %v682 = vmul.f32 %v681, %v371
    %v683 = vld [vmem:[#allocation11] sm:$0x1]
    %v684 = vadd.f32 %v682, 0.001
    %v685 = vrsqrt.pop %v684
    %v686 = vmul.f32 %v683, %v685
    %v688 = vlaneseq
    %v689 = vshrl.u32 %v688, 7
    %v690 = vsub.s32 0, %v689
    %v691 = vrot.slane %v686, %v690
    %v693 = vmul.f32 %v671, %v691
    %v694 = vmul.f32 %v672, %v691
    %v695 = vld [vmem:[#allocation13] sm:$0x1]
    %v697 = vlaneseq
    %v698 = vshrl.u32 %v697, 7
    %v699 = vsub.s32 0, %v698
    %v700 = vrot.slane %v695, %v699
    %v702 = vadd.f32 %v693, %v700
    %v703 = vadd.f32 %v694, %v700
    %v704 = vmax.f32 %v702, 0.0
    %v705 = vmax.f32 %v703, 0.0
    %v706 = vpack.c.bf16 %v705, %v704
    %v707 = vld [vmem:[#allocation14] sm:$0xff]
    %v708 = vld [vmem:[#allocation14 + $0x8] sm:$0xff]
    %v709 = vld [vmem:[#allocation14 + $0x10] sm:$0xff]
    %v710 = vld [vmem:[#allocation14 + $0x18] sm:$0xff]
    %v711 = vld [vmem:[#allocation14 + $0x20] sm:$0xff]
    %v712 = vld [vmem:[#allocation14 + $0x28] sm:$0xff]
    %v713 = vld [vmem:[#allocation14 + $0x30] sm:$0xff]
    %v714 = vld [vmem:[#allocation14 + $0x38] sm:$0xff]
    %v715 = vld [vmem:[#allocation14 + $0x40] sm:$0xff]
    %v716 = vld [vmem:[#allocation14 + $0x48] sm:$0xff]
    %v717 = vld [vmem:[#allocation14 + $0x50] sm:$0xff]
    %v718 = vld [vmem:[#allocation14 + $0x58] sm:$0xff]
    %v719 = vld [vmem:[#allocation14 + $0x60] sm:$0xff]
    %v720 = vld [vmem:[#allocation14 + $0x68] sm:$0xff]
    %v721 = vld [vmem:[#allocation14 + $0x70] sm:$0xff]
    %v722 = vld [vmem:[#allocation14 + $0x78] sm:$0xff]
    %v723 = vld [vmem:[%s11] sm:$0x3]
    %v725 = vlaneseq
    %v726 = vshrl.u32 %v725, 7
    %v727 = vsub.s32 0, %v726
    %v728 = vrot.slane %v723, %v727
    %v729 = vlaneseq
    %v730 = vshrl.u32 %v729, 7
    %v731 = vsub.s32 1, %v730
    %v732 = vrot.slane %v723, %v731
    %v751 = vunpack.c.l.b16 %v707
    %v752 = vunpack.c.h.b16 %v707
    %v753 = vunpack.c.l.b16 %v708
    %v754 = vunpack.c.h.b16 %v708
    %v755 = vunpack.c.l.b16 %v709
    %v756 = vunpack.c.h.b16 %v709
    %v757 = vunpack.c.l.b16 %v710
    %v758 = vunpack.c.h.b16 %v710
    %v759 = vunpack.c.l.b16 %v711
    %v760 = vunpack.c.h.b16 %v711
    %v761 = vunpack.c.l.b16 %v712
    %v762 = vunpack.c.h.b16 %v712
    %v763 = vunpack.c.l.b16 %v713
    %v764 = vunpack.c.h.b16 %v713
    %v765 = vunpack.c.l.b16 %v714
    %v766 = vunpack.c.h.b16 %v714
    %v767 = vunpack.c.l.b16 %v715
    %v768 = vunpack.c.h.b16 %v715
    %v769 = vunpack.c.l.b16 %v716
    %v770 = vunpack.c.h.b16 %v716
    %v771 = vunpack.c.l.b16 %v717
    %v772 = vunpack.c.h.b16 %v717
    %v773 = vunpack.c.l.b16 %v718
    %v774 = vunpack.c.h.b16 %v718
    %v775 = vunpack.c.l.b16 %v719
    %v776 = vunpack.c.h.b16 %v719
    %v777 = vunpack.c.l.b16 %v720
    %v778 = vunpack.c.h.b16 %v720
    %v779 = vunpack.c.l.b16 %v721
    %v780 = vunpack.c.h.b16 %v721
    %v781 = vunpack.c.l.b16 %v722
    %v782 = vunpack.c.h.b16 %v722
    %v783 = vpack.c.b16 %v753, %v751
    %v784 = vpack.c.b16 %v754, %v752
    %v785 = vpack.c.b16 %v757, %v755
    %v786 = vpack.c.b16 %v758, %v756
    %v787 = vpack.c.b16 %v761, %v759
    %v788 = vpack.c.b16 %v762, %v760
    %v789 = vpack.c.b16 %v765, %v763
    %v790 = vpack.c.b16 %v766, %v764
    %v791 = vpack.c.b16 %v769, %v767
    %v792 = vpack.c.b16 %v770, %v768
    %v793 = vpack.c.b16 %v773, %v771
    %v794 = vpack.c.b16 %v774, %v772
    %v795 = vpack.c.b16 %v777, %v775
    %v796 = vpack.c.b16 %v778, %v776
    %v797 = vpack.c.b16 %v781, %v779
    %v798 = vpack.c.b16 %v782, %v780
    %815 = vmatprep.subr.bf16.mxu0 %v798
    %816 = vmatpush1.bf16.msra.mxu0 %v797
    %817 = vmatprep.subr.bf16.mxu0 %v796
    %818 = vmatpush1.bf16.msra.mxu0 %v795
    %819 = vmatprep.subr.bf16.mxu0 %v794
    %820 = vmatpush1.bf16.msra.mxu0 %v793
    %821 = vmatprep.subr.bf16.mxu0 %v792
    %822 = vmatpush1.bf16.msra.mxu0 %v791
    %823 = vmatprep.subr.bf16.mxu0 %v790
    %824 = vmatpush1.bf16.msra.mxu0 %v789
    %825 = vmatprep.subr.bf16.mxu0 %v788
    %826 = vmatpush1.bf16.msra.mxu0 %v787
    %827 = vmatprep.subr.bf16.mxu0 %v786
    %828 = vmatpush1.bf16.msra.mxu0 %v785
    %829 = vmatprep.subr.bf16.mxu0 %v784
    %830 = vmatpush1.bf16.msra.mxu0 %v783
    %831 = vmatprep.subr.bf16.mxu0 0
    %832 = vmatpush2.bf16.msra.mxu0 0
    %833 = vmatprep.subr.bf16.mxu0 0
    %834 = vmatpush2.bf16.msra.mxu0 0
    %835 = vmatprep.subr.bf16.mxu0 0
    %836 = vmatpush2.bf16.msra.mxu0 0
    %837 = vmatprep.subr.bf16.mxu0 0
    %838 = vmatpush2.bf16.msra.mxu0 0
    %839 = vmatprep.subr.bf16.mxu0 0
    %840 = vmatpush2.bf16.msra.mxu0 0
    %841 = vmatprep.subr.bf16.mxu0 0
    %842 = vmatpush2.bf16.msra.mxu0 0
    %843 = vmatprep.subr.bf16.mxu0 0
    %844 = vmatpush2.bf16.msra.mxu0 0
    %845 = vmatprep.subr.bf16.mxu0 0
    %846 = vmatpush2.bf16.msra.mxu0 0
    %847 = vmatprep.mubr.bf16.mxu0 0
    %848 = vmatmul.mubr.bf16.gmra.mxu0 %v706
    %v849 = vpop.f32.mrf.mxu0
    %v850 = vadd.f32 %v728, %v849
    %v851 = vpop.f32.mrf.mxu0
    %v852 = vadd.f32 %v732, %v851
    %v853 = vpop.f32.mrf.mxu0
    %v854 = vadd.f32 %v728, %v853
    %v855 = vpop.f32.mrf.mxu0
    %v856 = vadd.f32 %v732, %v855
    %857 = vdwg.mxu0
    %v858 = vmax.f32 %v852, -4.0
    %v859 = vmax.f32 %v856, -4.0
    %v860 = vmin.f32 %v858, 4.0
    %v861 = vmin.f32 %v859, 4.0
    %v862 = vmul.f32 %v860, 0.25
    %v863 = vmul.f32 %v861, 0.25
    %v864 = vmul.f32 %v862, 1.442695
    %v865 = vpow.pop %v864
    %v866 = vmul.f32 %v863, 1.442695
    %v867 = vpow.pop %v866
    %v868 = vmul.f32 %v865, %v865
    %v869 = vmul.f32 %v867, %v867
    %870 = vst [vmem:[#allocation16] sm:$0xff] %v850
    %871 = vst [vmem:[#allocation16 + $0x8] sm:$0xff] %v854
    %872 = vst [vmem:[#allocation17] sm:$0xff] %v868
    %873 = vst [vmem:[#allocation17 + $0x8] sm:$0xff] %v869
    %v874 = vld [vmem:[%s12] sm:$0xff]
    %v875 = vld [vmem:[%s12 + $0x8] sm:$0xff]
    %v876 = vmul.f32 %v865, %v874
    %v877 = vmul.f32 %v867, %v875
    %v878 = vadd.f32 %v850, %v876
    %v879 = vadd.f32 %v854, %v877
    %880 = vst [vmem:[#allocation19] sm:$0xff] %v878
    %881 = vst [vmem:[#allocation19 + $0x8] sm:$0xff] %v879
    // Predicated region
    $region86: #{tpu_custom_call.1} parent=1 // pred_check
      _
    $region87: #{tpu_custom_call.1} parent=1 // pred_check_branch
      %883 = sbr.rel (0) target = $region89
    $region88: #{tpu_custom_call.1} parent=1 // pred_region
      %s885 = ssub.s32 256, 256
      %886 = vsyncadd [#allocation4], %s885
      %s887 = sshll.u32 [#allocation16], 4
      %s888 = int_to_ptr.vmem [resolvable:$true] %s887
      %893 = dma.vmem_to_hbm [thread:$0]  %s888, 256, %s13, [#allocation4], 128, 128, 8
    $region89: #{tpu_custom_call.1} parent=1 // pred_fallthru
      _
    // Predicated region
    $region90: #{tpu_custom_call.1} parent=1 // pred_check
      _
    $region91: #{tpu_custom_call.1} parent=1 // pred_check_branch
      %895 = sbr.rel (0) target = $region93
    $region92: #{tpu_custom_call.1} parent=1 // pred_region
      %s897 = ssub.s32 256, 256
      %898 = vsyncadd [#allocation18], %s897
      %s899 = sshll.u32 [#allocation17], 4
      %s900 = int_to_ptr.vmem [resolvable:$true] %s899
      %905 = dma.vmem_to_hbm [thread:$0]  %s900, 256, %s14, [#allocation18], 128, 128, 8
    $region93: #{tpu_custom_call.1} parent=1 // pred_fallthru
      _
    // Predicated region
    $region94: #{tpu_custom_call.1} parent=1 // pred_check
      _
    $region95: #{tpu_custom_call.1} parent=1 // pred_check_branch
      %907 = sbr.rel (0) target = $region97
    $region96: #{tpu_custom_call.1} parent=1 // pred_region
      %s909 = ssub.s32 256, 256
      %910 = vsyncadd [#allocation18], %s909
      %s911 = sshll.u32 [#allocation19], 4
      %s912 = int_to_ptr.vmem [resolvable:$true] %s911
      %917 = dma.vmem_to_hbm [thread:$0]  %s912, 256, %s15, [#allocation18], 128, 128, 8
    $region97: #{tpu_custom_call.1} parent=1 // pred_fallthru
      _
    // Predicated region
    $region98: #{tpu_custom_call.1} parent=1 // pred_check
      _
    $region99: #{tpu_custom_call.1} parent=1 // pred_check_branch
      %919 = sbr.rel (0) target = $region101
    $region100: #{tpu_custom_call.1} parent=1 // pred_region
      %920 = dma.done [#allocation4], 256
    $region101: #{tpu_custom_call.1} parent=1 // pred_fallthru
      _
    // Predicated region
    $region102: #{tpu_custom_call.1} parent=1 // pred_check
      _
    $region103: #{tpu_custom_call.1} parent=1 // pred_check_branch
      %922 = sbr.rel (0) target = $region105
    $region104: #{tpu_custom_call.1} parent=1 // pred_region
      %923 = dma.done [#allocation18], 256
    $region105: #{tpu_custom_call.1} parent=1 // pred_fallthru
      _
    // Predicated region
    $region106: #{tpu_custom_call.1} parent=1 // pred_check
      _
    $region107: #{tpu_custom_call.1} parent=1 // pred_check_branch
      %925 = sbr.rel (0) target = $region109
    $region108: #{tpu_custom_call.1} parent=1 // pred_region
      %926 = dma.done [#allocation18], 256
    $region109: #{tpu_custom_call.1} parent=1 // pred_fallthru
      _
    %927 = vsyncpa [#allocation3], 1
    %928 = vsyncpa [#allocation6], 1
    %929 = vsyncpa [#allocation9], 1
    %930 = vsyncpa [#allocation12], 1
    %931 = vsyncpa [#allocation15], 1
    %932 = vsyncpa [#allocation4], 1
    %933 = vsyncpa [#allocation18], 1

</llo_original>
